<compile_context>
chip_gen: v7x
topology: tpu7x:2x2x1
jax: 0.10.0
libtpu: 0.0.40
codegen_flags: <defaults>
</compile_context>

<pallas_src>
import jax
import jax.numpy as jnp
from jax.experimental import pallas as pl
from jax.experimental.pallas import tpu as pltpu


TOK_TILE = 128  # tokens gathered per grid step


def _round_up(x, m):
    return (x + m - 1) // m * m


def _gather_kernel(ids_ref, table_hbm, out_ref, sem):
    """DMA row-gather.

    ids_ref:   (N_pad,) int32 in SMEM (scalar-prefetched token ids)
    table_hbm: (V, D_pad) float32, resident in HBM (memory_space=pl.ANY)
    out_ref:   (TOK_TILE, D_pad) float32 VMEM output block
    sem:       scalar DMA semaphore shared by all row copies of this tile
    """
    tile = out_ref.shape[0]
    base = pl.program_id(0) * tile

    # Issue one row DMA per token of this tile (fire-and-forget).
    def _issue(j, carry):
        row = ids_ref[base + j]
        pltpu.make_async_copy(
            table_hbm.at[pl.ds(row, 1), :],
            out_ref.at[pl.ds(j, 1), :],
            sem,
        ).start()
        return carry

    jax.lax.fori_loop(0, tile, _issue, 0)

    # Drain: one wait per issued copy (all copies have identical size, so a
    # single shared semaphore is sufficient).
    def _drain(j, carry):
        pltpu.make_async_copy(
            table_hbm.at[pl.ds(0, 1), :],
            out_ref.at[pl.ds(j, 1), :],
            sem,
        ).wait()
        return carry

    jax.lax.fori_loop(0, tile, _drain, 0)


def embedding_lookup(ids_flat, table, *, tok_tile=TOK_TILE):
    """ids_flat: (N,) int32 with N % tok_tile == 0.
    table: (V, D_pad) f32 with D_pad % 128 == 0 (stays in HBM).
    Returns (N, D_pad) f32 gathered rows."""
    n = ids_flat.shape[0]
    v, d = table.shape
    assert n % tok_tile == 0, "pad N to a multiple of tok_tile"
    assert d % 128 == 0, "pad embedding dim to a multiple of 128 (lane-dense)"

    cost = pl.CostEstimate(
        flops=0,
        transcendentals=0,
        # read N rows of the table + write N rows of output + read N ids
        bytes_accessed=int(2 * n * d * 4 + n * 4),
    )

    return pl.pallas_call(
        _gather_kernel,
        out_shape=jax.ShapeDtypeStruct((n, d), table.dtype),
        grid_spec=pltpu.PrefetchScalarGridSpec(
            num_scalar_prefetch=1,                          # ids -> SMEM
            grid=(n // tok_tile,),
            in_specs=[
                pl.BlockSpec(memory_space=pl.ANY),          # table stays in HBM
            ],
            out_specs=pl.BlockSpec((tok_tile, d), lambda i, ids: (i, 0)),
            scratch_shapes=[pltpu.SemaphoreType.DMA(())],
        ),
        compiler_params=pltpu.CompilerParams(
            dimension_semantics=("parallel",),              # megacore-shardable
            vmem_limit_bytes=32 * 1024 * 1024,
        ),
        cost_estimate=cost,
    )(ids_flat.astype(jnp.int32), table)


class WordEmbedding:
    """JAX/Pallas port of the PyTorch WordEmbedding module (eval mode)."""

    def __init__(self, ntoken, advice_dim, dropout, key):
        self.ntoken = ntoken
        self.emb_dim = advice_dim
        self.dropout_p = dropout
        # Deterministic init: same shape as nn.Embedding(ntoken+1, advice_dim).
        w = jax.random.normal(key, (ntoken + 1, advice_dim), dtype=jnp.float32)
        # padding_idx=ntoken -> that row is zeros.
        w = w.at[ntoken].set(0.0)
        self.weight = w                          # logical (ntoken+1, D) weights
        # Kernel-side table: embedding dim padded to a multiple of 128 so the
        # row DMAs and output block are lane-dense / tile-aligned.
        d_pad = _round_up(advice_dim, 128)
        self.d_pad = d_pad
        self.table_padded = (
            jnp.zeros((ntoken + 1, d_pad), jnp.float32).at[:, :advice_dim].set(w)
        )

    def __call__(self, x):
        # x: (batch, seq) int32 token ids in [0, ntoken].
        batch = x.shape[0]
        ids_flat = x.reshape(-1).astype(jnp.int32)
        n = ids_flat.shape[0]
        # Pad the token stream with padding_idx so the extra rows gather the
        # all-zero pad row; sliced off below.
        n_pad = _round_up(max(n, 1), TOK_TILE)
        ids_padded = jnp.full((n_pad,), self.ntoken, jnp.int32).at[:n].set(ids_flat)

        emb = embedding_lookup(ids_padded, self.table_padded)   # (n_pad, d_pad)
        emb = emb[:n, : self.emb_dim]                            # (batch*seq, D)

        # TODO(synk): Dropout is identity in eval mode; training-mode dropout
        # would use pltpu.prng_seed/prng_random_bits inside the kernel.
        return emb.reshape(batch, -1, self.emb_dim)              # (batch, seq, D)


if __name__ == "__main__":
    key = jax.random.PRNGKey(0)
    k_w, k_x = jax.random.split(key)

    ntoken = 50
    advice_dim = 32
    batch, seq = 2, 8

    model = WordEmbedding(ntoken, advice_dim, dropout=0.2, key=k_w)

    # Token ids in [0, ntoken]; include the padding index ntoken explicitly.
    x = jax.random.randint(k_x, (batch, seq), 0, ntoken, dtype=jnp.int32)
    x = x.at[0, 0].set(ntoken)  # exercise padding_idx row (should embed to 0)

    out = model(x)
    out = jax.block_until_ready(out)

    # Reference check in plain JAX (gather + zeroed pad row).
    ref = model.weight[x.reshape(-1)].reshape(batch, -1, advice_dim)
    assert out.shape == (batch, seq, advice_dim)
    assert jnp.allclose(out, ref, atol=1e-6), "mismatch vs reference gather"
    assert jnp.all(out[0, 0] == 0.0), "padding row not zero"

    print("KERNEL_OK")
</pallas_src>

<mosaic_0001>
module attributes {stable_mosaic.version = 11 : i64} {
  func.func @_gather_kernel(%arg0: i32, %arg1: memref<128xi32, #tpu.memory_space<smem>>, %arg2: memref<51x128xf32, #tpu.memory_space<any>>, %arg3: memref<128x128xf32, #tpu.memory_space<vmem>>, %arg4: memref<!tpu.dma_semaphore, #tpu.memory_space<semaphore_mem>>) attributes {dimension_semantics = [#tpu.dimension_semantics<parallel>], iteration_bounds = array<i64: 1>, scalar_prefetch = 1 : i64, scratch_operands = 1 : i64, tpu.core_type = #tpu.core_type<tc>, window_params = [{}, {transform_indices = @transform_1, window_bounds = array<i64: 128, 128>}]} {
    %c128_i32 = arith.constant 128 : i32
    %0 = arith.muli %arg0, %c128_i32 : i32
    %c0_i32 = arith.constant 0 : i32
    %c128_i32_0 = arith.constant 128 : i32
    %1 = arith.addi %c0_i32, %c128_i32_0 : i32
    %c1_i32 = arith.constant 1 : i32
    scf.for %arg5 = %c0_i32 to %1 step %c1_i32  : i32 {
      %3 = arith.addi %0, %arg5 : i32
      %4 = arith.index_cast %3 : i32 to index
      %5 = memref.load %arg1[%4] : memref<128xi32, #tpu.memory_space<smem>>
      %c0_i32_6 = arith.constant 0 : i32
      %6 = tpu.memref_slice %arg2[%5, %c0_i32_6] : memref<51x128xf32, #tpu.memory_space<any>> -> memref<1x128xf32, #tpu.memory_space<any>>
      %c0_i32_7 = arith.constant 0 : i32
      %7 = tpu.memref_slice %arg3[%arg5, %c0_i32_7] : memref<128x128xf32, #tpu.memory_space<vmem>> -> memref<1x128xf32, #tpu.memory_space<vmem>>
      tpu.enqueue_dma source(%6 : memref<1x128xf32, #tpu.memory_space<any>>) target(%7 : memref<1x128xf32, #tpu.memory_space<vmem>>) target_semaphore(%arg4 : memref<!tpu.dma_semaphore, #tpu.memory_space<semaphore_mem>>)
    }
    %c128_i32_1 = arith.constant 128 : i32
    %c0_i32_2 = arith.constant 0 : i32
    %c128_i32_3 = arith.constant 128 : i32
    %2 = arith.addi %c0_i32_2, %c128_i32_3 : i32
    %c1_i32_4 = arith.constant 1 : i32
    scf.for %arg5 = %c0_i32_2 to %2 step %c1_i32_4  : i32 {
      %c0_i32_6 = arith.constant 0 : i32
      %c0_i32_7 = arith.constant 0 : i32
      %3 = tpu.memref_slice %arg2[%c0_i32_6, %c0_i32_7] : memref<51x128xf32, #tpu.memory_space<any>> -> memref<1x128xf32, #tpu.memory_space<any>>
      %c0_i32_8 = arith.constant 0 : i32
      %4 = tpu.memref_slice %arg3[%arg5, %c0_i32_8] : memref<128x128xf32, #tpu.memory_space<vmem>> -> memref<1x128xf32, #tpu.memory_space<vmem>>
      tpu.wait_dma2 semaphore(%arg4 : memref<!tpu.dma_semaphore, #tpu.memory_space<semaphore_mem>>) src(%3 : memref<1x128xf32, #tpu.memory_space<any>>) dst(%4 : memref<1x128xf32, #tpu.memory_space<vmem>>)
    }
    %c128_i32_5 = arith.constant 128 : i32
    return
  }
  func.func @transform_1(%arg0: i32, %arg1: memref<128xi32, #tpu.memory_space<smem>>) -> (i32, i32) {
    %c0_i32 = arith.constant 0 : i32
    %c0_i32_0 = arith.constant 0 : i32
    return %arg0, %c0_i32 : i32, i32
  }
}

</mosaic_0001>

<llo_original>
// kernel: tpu_custom_call.1
$region0: #{tpu_custom_call.1}
  #allocation0 [shape = 'u32[]', space=smem, size = 0x4, offset = 0x4, fixed_abs, tag = 'smem constant byte address 0x4 - core index']
  #allocation1 [shape = 'u32[144,128]{1,0:T(1,128)}', space=vmem, size = 0x12000, scoped, tag = 'internal scratch']
  #allocation2 [shape = 's32[1]{0}', space=sflag, size = 0x4, scoped, tag = 'scratch operand']
  #allocation3 [shape = 's32[1]{0}', space=sflag, size = 0x4, scoped, tag = 'scoped memory for tpu_custom_call.1']
  #allocation4 [shape = 'u8[512]{0}', space=smem, size = 0x200, scoped, tag = 'prefetched SMEM operand 0']
  #allocation7 [shape = 's32[]', space=sflag, size = 0x4, offset = 0, fixed_abs, tag = 'sflag constant byte address 0x0 - dummy sync flag']
  #allocation8 [shape = 's32[]', space=sflag, size = 0x4, offset = 0, fixed_abs, tag = 'sflag constant byte address 0x0 - dummy sync flag']
  #allocation9 [shape = 'u32[]', space=smem, size = 0x4, offset = 0x44, fixed_abs, tag = 'smem constant byte address 0x44 - assertion arg 0']
  #allocation10 [shape = 'u32[]', space=smem, size = 0x4, offset = 0x48, fixed_abs, tag = 'smem constant byte address 0x48 - assertion arg 1']
  %s0 = inlined_call_operand.hbm [shape: s32[128], index: 0, kind: input, shape index: {}]
  %s1 = inlined_call_operand.hbm [shape: f32[51,128], index: 1, kind: input, shape index: {}]
  %s2 = inlined_call_operand.hbm [shape: f32[128,128], index: 2, kind: output, shape index: {}]
  %s3 = sld [smem:[#allocation0]]
  $region28: #{tpu_custom_call.1} parent=0
    _
  %s5 = ssub.s32 1, %s3
  %s6 = scalar_select 0, %s5, %s3
  %8 = dma.hbm_to_smem %s0, 16, [#allocation4], [#allocation3]
  %9 = dma.done [#allocation3], 16
  %10 = sfence
  $region1: #{tpu_custom_call.1} parent=0
    #allocation5 [shape = 'u8[65536]{0}', space=vmem, size = 0x10000, scoped, tag = 'output window, operand 0, single buffered']
    #allocation6 [shape = 's32[1]{0}', space=sflag, size = 0x4, scoped, tag = 'scoped memory for tpu_custom_call.1']
    %11 = vsyncpa [#allocation6], 0
    %s12 = smul.u32 0, 128
    loop: start=0, step=1, limit=128
    $region2: #{tpu_custom_call.1} parent=1 // loop_pre_header
      _
    $region3: #{tpu_custom_call.1} parent=1 // loop_header
      %s14 = sphi 0, %s18
      %p15 = scmp.ge.s32.totalorder %s14, 128
    $region4: #{tpu_custom_call.1} parent=1 // loop_header_branch
      %17 = sbr.rel (%p15) target = $region8
    $region5: #{tpu_custom_call.1} parent=1 // loop_body
      %s19 = sadd.s32 %s12, %s14
      %s20 = sld [smem:[#allocation4 + %s19]]
      %s21 = smul.addr %s20, 16
      %s22 = scalar_lea.hbm %s1, %s21
      %s23 = scalar_lea.vmem [#allocation5], %s14
      // Predicated region
      $region9: #{tpu_custom_call.1} parent=5 // pred_check
        _
      $region10: #{tpu_custom_call.1} parent=5 // pred_check_branch
        %25 = sbr.rel target = $region12
      $region11: #{tpu_custom_call.1} parent=5 // pred_region
        %26 = sst [smem:[#allocation9]] [#allocation8]
        %27 = sst [smem:[#allocation10]] [#allocation7]
      $region12: #{tpu_custom_call.1} parent=5 // pred_fallthru
        _
      %29 = shalt.err (0)
      %s31 = sshll.u32 %s23, 4
      %s32 = int_to_ptr.vmem [resolvable:$true] %s31
      %34 = dma.hbm_to_vmem [thread:$0]  %s22, 16, %s32, [#allocation2]
    $region6: #{tpu_custom_call.1} parent=1 // loop_footer
      %s18 = sadd.s32 1, %s14
    $region7: #{tpu_custom_call.1} parent=1 // loop_footer_branch
      %13 = sbr.rel target = $region3
    $region8: #{tpu_custom_call.1} parent=1 // loop_exit
      _
    loop: start=0, step=1, limit=128
    $region13: #{tpu_custom_call.1} parent=1 // loop_pre_header
      _
    $region14: #{tpu_custom_call.1} parent=1 // loop_header
      %s36 = sphi 0, %s40
      %p37 = scmp.ge.s32.totalorder %s36, 128
    $region15: #{tpu_custom_call.1} parent=1 // loop_header_branch
      %39 = sbr.rel (%p37) target = $region19
    $region16: #{tpu_custom_call.1} parent=1 // loop_body
      %s41 = smul.u32 1, 1
      %s42 = sshll.u32 %s41, 4
      %43 = dma.done [#allocation2], %s42
    $region17: #{tpu_custom_call.1} parent=1 // loop_footer
      %s40 = sadd.s32 1, %s36
    $region18: #{tpu_custom_call.1} parent=1 // loop_footer_branch
      %35 = sbr.rel target = $region14
    $region19: #{tpu_custom_call.1} parent=1 // loop_exit
      _
    // Predicated region
    $region20: #{tpu_custom_call.1} parent=1 // pred_check
      _
    $region21: #{tpu_custom_call.1} parent=1 // pred_check_branch
      %45 = sbr.rel (0) target = $region23
    $region22: #{tpu_custom_call.1} parent=1 // pred_region
      %s47 = ssub.s32 2048, 2048
      %48 = vsyncadd [#allocation6], %s47
      %s49 = sshll.u32 [#allocation5], 4
      %s50 = int_to_ptr.vmem [resolvable:$true] %s49
      %55 = dma.vmem_to_hbm [thread:$0]  %s50, 2048, %s2, [#allocation6], 128, 128, 8
    $region23: #{tpu_custom_call.1} parent=1 // pred_fallthru
      _
    // Predicated region
    $region24: #{tpu_custom_call.1} parent=1 // pred_check
      _
    $region25: #{tpu_custom_call.1} parent=1 // pred_check_branch
      %57 = sbr.rel (0) target = $region27
    $region26: #{tpu_custom_call.1} parent=1 // pred_region
      %58 = dma.done [#allocation6], 2048
    $region27: #{tpu_custom_call.1} parent=1 // pred_fallthru
      _
    %59 = vsyncpa [#allocation6], 1
  %60 = vsyncmov [#allocation2]
  %s61 = vpop.sfrf %60
  %p62 = scmp.eq.s32.totalorder %s61, 0
  %p63 = pneg %p62
  %65 = shalt.err (%p63)

</llo_original>
